<compile_context>
chip_gen: v7x
topology: tpu7x:2x2x1
jax: 0.10.0
libtpu: 0.0.40
codegen_flags: <defaults>
</compile_context>

<pallas_src>
import functools

import jax
import jax.numpy as jnp
from jax.experimental import pallas as pl
from jax.experimental.pallas import tpu as pltpu


# ---------------------------------------------------------------------------
# Stage 1: adaptive avg + max pool to 1x1, tiled over the spatial axis.
# ---------------------------------------------------------------------------
def _pool_kernel(x_ref, pooled_ref, sum_acc, max_acc, *, hw_total, hw_tile):
    # x_ref:      (1, c_blk, hw_tile)  current (batch, channel-block, HW tile)
    # pooled_ref: (1, c_blk, 2)        [:, :, 0] = mean, [:, :, 1] = max
    # sum_acc:    (c_blk, 1) f32       running spatial sum
    # max_acc:    (c_blk, 1) f32       running spatial max
    t = pl.program_id(2)
    n_t = pl.num_programs(2)
    has_tail = (hw_total % hw_tile) != 0   # static python bool

    @pl.when(t == 0)
    def _init():
        sum_acc[...] = jnp.zeros_like(sum_acc)
        max_acc[...] = jnp.full_like(max_acc, -jnp.inf)

    def _accumulate(masked):
        x = x_ref[0]                       # (c_blk, hw_tile), native dtype
        if masked:
            # Only the tail tile pays for the mask (gated by pl.when below).
            col = jax.lax.broadcasted_iota(jnp.int32, x.shape, 1) + t * hw_tile
            valid = col < hw_total
            x_sum = jnp.where(valid, x, jnp.zeros_like(x))
            x_max = jnp.where(valid, x, jnp.full_like(x, -jnp.inf))
        else:
            x_sum = x
            x_max = x
        # Widening accumulate into f32; max kept exact.
        sum_acc[...] += jnp.sum(x_sum, axis=1, keepdims=True, dtype=jnp.float32)
        max_acc[...] = jnp.maximum(
            max_acc[...],
            jnp.max(x_max, axis=1, keepdims=True).astype(jnp.float32))

    if has_tail:
        @pl.when(t < n_t - 1)
        def _interior():
            _accumulate(masked=False)

        @pl.when(t == n_t - 1)
        def _tail():
            _accumulate(masked=True)
    else:
        _accumulate(masked=False)

    @pl.when(t == n_t - 1)
    def _finalize():
        inv_hw = jnp.float32(1.0 / hw_total)   # true H*W, not the tile size
        pooled_ref[0, :, 0:1] = (sum_acc[...] * inv_hw).astype(pooled_ref.dtype)
        pooled_ref[0, :, 1:2] = max_acc[...].astype(pooled_ref.dtype)


# ---------------------------------------------------------------------------
# Stage 2: fc (W1 -> ReLU -> W2) on both pooled branches, then
# sigmoid(avg_branch + max_branch).  Weights are used untransposed; the pooled
# (C, 2) slab per batch element is already the layout the MXU wants as RHS.
# ---------------------------------------------------------------------------
def _fc_kernel(p_ref, w1_ref, w2_ref, o_ref):
    # p_ref:  (B, C, 2) f32   [..., 0] = mean branch, [..., 1] = max branch
    # w1_ref: (Cr, C); w2_ref: (C, Cr); o_ref: (C, B)
    w1 = w1_ref[...].astype(jnp.float32)
    w2 = w2_ref[...].astype(jnp.float32)
    batch = p_ref.shape[0]
    # B is small for CBAM heads; the per-batch matmuls (N=2) are negligible on
    # the MXU, so a static loop keeps every op in its native layout.
    for b in range(batch):
        pb = p_ref[b].astype(jnp.float32)                        # (C, 2)
        h = jax.lax.dot_general(w1, pb, (((1,), (0,)), ((), ())),
                                preferred_element_type=jnp.float32)  # (Cr, 2)
        h = jnp.maximum(h, 0.0)
        y = jax.lax.dot_general(w2, h, (((1,), (0,)), ((), ())),
                                preferred_element_type=jnp.float32)  # (C, 2)
        s = jnp.sum(y, axis=1, keepdims=True)                    # fc(avg)+fc(max)
        o_ref[:, b:b + 1] = jax.nn.sigmoid(s).astype(o_ref.dtype)


def _pick_hw_tile(c_block, hw, itemsize, target_bytes):
    """Spatial tile: multiple of 128 lanes, x block <= target_bytes."""
    if hw <= 128:
        return hw
    max_lanes = (target_bytes // max(1, c_block * itemsize)) // 128 * 128
    max_lanes = max(128, max_lanes)
    return hw if hw <= max_lanes else max_lanes


def channel_attention(x, w1, w2, *, hw_tile=None, c_tile=None,
                      target_block_bytes=6 * 1024 * 1024):
    """x: (B, C, H, W) NCHW; w1: (C//r, C); w2: (C, C//r). Returns (B, C, 1, 1)."""
    B, C, H, W = x.shape
    Cr = w1.shape[0]
    assert w1.shape == (Cr, C) and w2.shape == (C, Cr)
    HW = H * W
    x_flat = x.reshape(B, C, HW)
    itemsize = jnp.dtype(x.dtype).itemsize

    # dtype-aware sublane packing: 8 rows for f32, 16 for bf16, 32 for int8/fp8.
    sublane = max(8, 8 * (4 // max(1, itemsize)))

    # Channel blocking: second "parallel" grid axis; bounds VMEM for large C.
    auto_c = c_tile is None
    if c_tile is None:
        c_tile = C if C <= 256 else 256
    c_tile = min(c_tile, C)
    if c_tile != C:
        c_tile = max(sublane, (c_tile // sublane) * sublane)
    n_c = pl.cdiv(C, c_tile)
    # v7x has two TensorCores: make sure the (b, c) parallel axes expose >= 2
    # blocks, else one core idles for the whole pooling stage.
    if auto_c and B * n_c < 2 and C >= 2 * sublane:
        c_tile = max(sublane, ((C // 2 + sublane - 1) // sublane) * sublane)
        n_c = pl.cdiv(C, c_tile)
    # Note: when C % c_tile != 0 the last channel block reads past the array;
    # those rows are garbage but per-channel independent and masked out of the
    # writeback DMA, so the result is unaffected.

    # Spatial tile: multiple of 128 lanes (or the full HW), ~6 MiB per x block
    # so the ~0.35 us per-grid-step overhead is amortized even at v7x HBM BW.
    if hw_tile is None:
        hw_tile = _pick_hw_tile(c_tile, HW, itemsize, target_block_bytes)
    hw_tile = min(hw_tile, HW)
    if hw_tile < HW:
        hw_tile = max(128, (hw_tile // 128) * 128)
        if hw_tile >= HW:
            hw_tile = HW
    n_hw = pl.cdiv(HW, hw_tile)

    # VMEM budget derived from the actual block sizes (x double-buffered, out
    # double-buffered, scratch) + headroom; capped under v7x's 64 MiB physical.
    x_block_bytes = c_tile * hw_tile * itemsize
    out_block_bytes = c_tile * 2 * 4
    scratch_bytes = 2 * c_tile * 4
    footprint = 2 * x_block_bytes + 2 * out_block_bytes + scratch_bytes
    vmem_limit = int(min(max(footprint + (8 << 20), 16 << 20), 56 << 20))

    pool_kernel = functools.partial(_pool_kernel, hw_total=HW, hw_tile=hw_tile)

    pooled = pl.pallas_call(
        pool_kernel,
        out_shape=jax.ShapeDtypeStruct((B, C, 2), jnp.float32),
        grid_spec=pltpu.PrefetchScalarGridSpec(
            num_scalar_prefetch=0,
            grid=(B, n_c, n_hw),
            in_specs=[pl.BlockSpec((1, c_tile, hw_tile),
                                   lambda b, c, t: (b, c, t))],
            out_specs=pl.BlockSpec((1, c_tile, 2),
                                   lambda b, c, t: (b, c, 0)),
            scratch_shapes=[pltpu.VMEM((c_tile, 1), jnp.float32),   # running sum
                            pltpu.VMEM((c_tile, 1), jnp.float32)],  # running max
        ),
        compiler_params=pltpu.CompilerParams(
            dimension_semantics=("parallel", "parallel", "arbitrary"),
            vmem_limit_bytes=vmem_limit,
        ),
    )(x_flat)

    # Tiny fc + sigmoid: one launch, weights untransposed, no concat / extra
    # HBM round trip of the pooled tensor.
    attn_cb = pl.pallas_call(
        _fc_kernel,
        out_shape=jax.ShapeDtypeStruct((C, B), x.dtype),
    )(pooled, w1, w2)

    return jnp.transpose(attn_cb).reshape(B, C, 1, 1)


def channel_attention_ref(x, w1, w2):
    """Pure-JAX reference mirroring the PyTorch forward."""
    avg = jnp.mean(x, axis=(2, 3))                         # (B, C)
    mx = jnp.max(x, axis=(2, 3))                           # (B, C)

    def fc(p):
        h = jnp.maximum(p @ w1.T, 0.0)
        return h @ w2.T

    out = jax.nn.sigmoid(fc(avg) + fc(mx))
    return out.reshape(*out.shape, 1, 1)


if __name__ == "__main__":
    def run_case(B, C, H, W, reduction, hw_tile=None, c_tile=None):
        Cr = max(1, C // reduction)
        key = jax.random.PRNGKey(0)
        kx, k1, k2 = jax.random.split(key, 3)
        x = jax.random.normal(kx, (B, C, H, W), dtype=jnp.float32)
        w1 = 0.1 * jax.random.normal(k1, (Cr, C), dtype=jnp.float32)
        w2 = 0.1 * jax.random.normal(k2, (C, Cr), dtype=jnp.float32)

        out = jax.block_until_ready(
            channel_attention(x, w1, w2, hw_tile=hw_tile, c_tile=c_tile))
        ref = jax.block_until_ready(channel_attention_ref(x, w1, w2))

        assert out.shape == (B, C, 1, 1), out.shape
        assert jnp.allclose(out, ref, atol=1e-5, rtol=1e-5), \
            f"mismatch vs reference for case {(B, C, H, W)}"

    # Tiny case (C=4, full-dim channel block below the sublane tile).
    run_case(2, 4, 16, 16, 2)
    # Small default case (single HW tile, single channel block).
    run_case(2, 32, 16, 16, 16)
    # Forced HW tiling, no tail: exercises the running sum/max accumulators.
    run_case(2, 32, 32, 32, 16, hw_tile=256)
    # Forced HW tiling with a ragged tail: exercises the gated mask path.
    run_case(2, 32, 18, 18, 8, hw_tile=128)
    # B=1: exercises the automatic channel split for dual-TensorCore occupancy.
    run_case(1, 64, 12, 12, 8)
    # Larger channel count: exercises multiple channel blocks.
    run_case(2, 512, 16, 16, 16, c_tile=256)

    print("KERNEL_OK")
</pallas_src>

<mosaic_0001>
module attributes {stable_mosaic.version = 11 : i64} {
  func.func @_pool_kernel(%arg0: i32, %arg1: i32, %arg2: i32, %arg3: memref<1x4x256xf32, #tpu.memory_space<vmem>>, %arg4: memref<1x4x2xf32, #tpu.memory_space<vmem>>, %arg5: memref<4x1xf32, #tpu.memory_space<vmem>>, %arg6: memref<4x1xf32, #tpu.memory_space<vmem>>) attributes {dimension_semantics = [#tpu.dimension_semantics<parallel>, #tpu.dimension_semantics<parallel>, #tpu.dimension_semantics<arbitrary>], iteration_bounds = array<i64: 2, 1, 1>, scalar_prefetch = 0 : i64, scratch_operands = 2 : i64, tpu.core_type = #tpu.core_type<tc>, window_params = [{transform_indices = @transform_0, window_bounds = array<i64: 1, 4, 256>}, {transform_indices = @transform_1, window_bounds = array<i64: 1, 4, 2>}]} {
    %c0_i32 = arith.constant 0 : i32
    %0 = arith.cmpi eq, %arg2, %c0_i32 : i32
    %1 = arith.extui %0 : i1 to i32
    %c0_i32_0 = arith.constant 0 : i32
    %2 = arith.cmpi ne, %1, %c0_i32_0 : i32
    scf.if %2 {
      %cst_14 = arith.constant 0.000000e+00 : f32
      %18 = vector.broadcast %cst_14 : f32 to vector<4x1xf32>
      %c0_15 = arith.constant 0 : index
      %c0_16 = arith.constant 0 : index
      %19 = vector.load %arg5[%c0_15, %c0_16] : memref<4x1xf32, #tpu.memory_space<vmem>>, vector<4x1xf32>
      tpu.vector_store %arg5[%c0_15, %c0_16], %18 {strides = array<i32>} : memref<4x1xf32, #tpu.memory_space<vmem>>, vector<4x1xf32>,
      %cst_17 = arith.constant 0xFF800000 : f32
      %20 = vector.broadcast %cst_17 : f32 to vector<4x1xf32>
      %c0_18 = arith.constant 0 : index
      %c0_19 = arith.constant 0 : index
      %21 = vector.load %arg6[%c0_18, %c0_19] : memref<4x1xf32, #tpu.memory_space<vmem>>, vector<4x1xf32>
      tpu.vector_store %arg6[%c0_18, %c0_19], %20 {strides = array<i32>} : memref<4x1xf32, #tpu.memory_space<vmem>>, vector<4x1xf32>,
    } else {
    }
    %c0 = arith.constant 0 : index
    %c0_1 = arith.constant 0 : index
    %c0_2 = arith.constant 0 : index
    %3 = vector.load %arg3[%c0, %c0_1, %c0_2] : memref<1x4x256xf32, #tpu.memory_space<vmem>>, vector<1x4x256xf32>
    %4 = vector.shape_cast %3 : vector<1x4x256xf32> to vector<4x256xf32>
    %c0_3 = arith.constant 0 : index
    %c0_4 = arith.constant 0 : index
    %5 = vector.load %arg5[%c0_3, %c0_4] : memref<4x1xf32, #tpu.memory_space<vmem>>, vector<4x1xf32>
    %cst = arith.constant dense<0.000000e+00> : vector<4xf32>
    %6 = vector.multi_reduction <add>, %4, %cst [1] : vector<4x256xf32> to vector<4xf32>
    %7 = vector.shape_cast %6 : vector<4xf32> to vector<4x1xf32>
    %8 = arith.addf %5, %7 : vector<4x1xf32>
    %c0_5 = arith.constant 0 : index
    %c0_6 = arith.constant 0 : index
    %9 = vector.load %arg5[%c0_5, %c0_6] : memref<4x1xf32, #tpu.memory_space<vmem>>, vector<4x1xf32>
    tpu.vector_store %arg5[%c0_5, %c0_6], %8 {strides = array<i32>} : memref<4x1xf32, #tpu.memory_space<vmem>>, vector<4x1xf32>,
    %c0_7 = arith.constant 0 : index
    %c0_8 = arith.constant 0 : index
    %10 = vector.load %arg6[%c0_7, %c0_8] : memref<4x1xf32, #tpu.memory_space<vmem>>, vector<4x1xf32>
    %cst_9 = arith.constant dense<0xFF800000> : vector<4xf32>
    %11 = vector.multi_reduction <maximumf>, %4, %cst_9 [1] : vector<4x256xf32> to vector<4xf32>
    %12 = vector.shape_cast %11 : vector<4xf32> to vector<4x1xf32>
    %13 = arith.maximumf %10, %12 : vector<4x1xf32>
    %c0_10 = arith.constant 0 : index
    %c0_11 = arith.constant 0 : index
    %14 = vector.load %arg6[%c0_10, %c0_11] : memref<4x1xf32, #tpu.memory_space<vmem>>, vector<4x1xf32>
    tpu.vector_store %arg6[%c0_10, %c0_11], %13 {strides = array<i32>} : memref<4x1xf32, #tpu.memory_space<vmem>>, vector<4x1xf32>,
    %c0_i32_12 = arith.constant 0 : i32
    %15 = arith.cmpi eq, %arg2, %c0_i32_12 : i32
    %16 = arith.extui %15 : i1 to i32
    %c0_i32_13 = arith.constant 0 : i32
    %17 = arith.cmpi ne, %16, %c0_i32_13 : i32
    scf.if %17 {
      %c0_14 = arith.constant 0 : index
      %c0_15 = arith.constant 0 : index
      %18 = vector.load %arg5[%c0_14, %c0_15] : memref<4x1xf32, #tpu.memory_space<vmem>>, vector<4x1xf32>
      %cst_16 = arith.constant 3.906250e-03 : f32
      %19 = vector.broadcast %cst_16 : f32 to vector<4x1xf32>
      %20 = arith.mulf %18, %19 : vector<4x1xf32>
      %c0_17 = arith.constant 0 : index
      %c0_18 = arith.constant 0 : index
      %c0_19 = arith.constant 0 : index
      %21 = vector.load %arg4[%c0_17, %c0_18, %c0_19] : memref<1x4x2xf32, #tpu.memory_space<vmem>>, vector<1x4x1xf32>
      %22 = vector.shape_cast %21 : vector<1x4x1xf32> to vector<4x1xf32>
      %23 = vector.shape_cast %20 : vector<4x1xf32> to vector<1x4x1xf32>
      tpu.vector_store %arg4[%c0_17, %c0_18, %c0_19], %23 {strides = array<i32>} : memref<1x4x2xf32, #tpu.memory_space<vmem>>, vector<1x4x1xf32>,
      %c0_20 = arith.constant 0 : index
      %c0_21 = arith.constant 0 : index
      %24 = vector.load %arg6[%c0_20, %c0_21] : memref<4x1xf32, #tpu.memory_space<vmem>>, vector<4x1xf32>
      %c0_22 = arith.constant 0 : index
      %c0_23 = arith.constant 0 : index
      %c1 = arith.constant 1 : index
      %25 = vector.load %arg4[%c0_22, %c0_23, %c1] : memref<1x4x2xf32, #tpu.memory_space<vmem>>, vector<1x4x1xf32>
      %26 = vector.shape_cast %25 : vector<1x4x1xf32> to vector<4x1xf32>
      %27 = vector.shape_cast %24 : vector<4x1xf32> to vector<1x4x1xf32>
      tpu.vector_store %arg4[%c0_22, %c0_23, %c1], %27 {strides = array<i32>} : memref<1x4x2xf32, #tpu.memory_space<vmem>>, vector<1x4x1xf32>,
    } else {
    }
    return
  }
  func.func @transform_0(%arg0: i32, %arg1: i32, %arg2: i32) -> (i32, i32, i32) {
    %c0_i32 = arith.constant 0 : i32
    return %arg0, %arg1, %arg2 : i32, i32, i32
  }
  func.func @transform_1(%arg0: i32, %arg1: i32, %arg2: i32) -> (i32, i32, i32) {
    %c0_i32 = arith.constant 0 : i32
    %c0_i32_0 = arith.constant 0 : i32
    return %arg0, %arg1, %c0_i32 : i32, i32, i32
  }
}

</mosaic_0001>

<llo_original>
// kernel: tpu_custom_call.1
$region0: #{tpu_custom_call.1}
  #allocation0 [shape = 'u32[]', space=smem, size = 0x4, offset = 0x4, fixed_abs, tag = 'smem constant byte address 0x4 - core index']
  #allocation1 [shape = 'u32[144,128]{1,0:T(1,128)}', space=vmem, size = 0x12000, scoped, tag = 'internal scratch']
  #allocation2 [shape = 'f32[4,1]{1,0:T(4,128)}', space=vmem, size = 0x800, scoped, tag = 'scratch operand']
  #allocation3 [shape = 'f32[4,1]{1,0:T(4,128)}', space=vmem, size = 0x800, scoped, tag = 'scratch operand']
  %s0 = inlined_call_operand.hbm [shape: f32[2,4,256], index: 0, kind: input, shape index: {}]
  %s1 = inlined_call_operand.vmem [shape: f32[2,4,2], index: 1, kind: output, shape index: {}]
  %s2 = sld [smem:[#allocation0]]
  $region49: #{tpu_custom_call.1} parent=0
    _
  %s4 = ssub.s32 1, %s2
  %s5 = scalar_select 0, %s4, %s2
  $region1: #{tpu_custom_call.1} parent=0
    #allocation4 [shape = 'u8[8192]{0}', space=vmem, size = 0x2000, scoped, tag = 'input window, operand 0']
    #allocation5 [shape = 's32[2]{0}', space=sflag, size = 0x8, scoped, tag = 'scoped memory for tpu_custom_call.1']
    %6 = vsyncpa [#allocation5], 0
    %s7 = scalar_lea.sflag [#allocation5], 1
    %8 = vsyncpa %s7, 0
    loop: start=0, step=1, limit=4
    $region2: #{tpu_custom_call.1} parent=1 // loop_pre_header
      _
    $region3: #{tpu_custom_call.1} parent=1 // loop_header
      %s10 = sphi 0, %s14
      %p11 = scmp.ge.s32.totalorder %s10, 4
      %s17 = sphi 0, %s36
      %s18 = sphi 0, %s32
      %s19 = sphi 0, %s28
      %s20 = sphi 0, %s17
      %s21 = sphi 0, %s18
      %s22 = sphi 0, %s19
      %s23 = sphi 0, %s20
      %s24 = sphi 0, %s21
      %s25 = sphi 0, %s22
      %s43 = sphi 0, %s45
      %s46 = sphi 0, %s43
      %s47 = sphi 0, %s46
      %s63 = sphi 0, %s47
      %s71 = sphi 0, %s73
      %s74 = sphi 0, %s71
      %s75 = sphi 0, %s74
      %s91 = sphi 0, %s75
    $region4: #{tpu_custom_call.1} parent=1 // loop_header_branch
      %13 = sbr.rel (%p11) target = $region8
    $region5: #{tpu_custom_call.1} parent=1 // loop_body
      %s15 = ssub.s32 %s10, 1
      %s16 = ssub.s32 %s10, 2
      %s26 = sadd.s32 1, %s19
      %p27 = scmp.ge.s32.totalorder %s26, 1
      %s28 = scalar_select %p27, 0, %s26
      %s29 = sadd.s32 1, %s18
      %s30 = scalar_select %p27, %s29, %s18
      %p31 = scmp.ge.s32.totalorder %s30, 1
      %s32 = scalar_select %p31, 0, %s30
      %s33 = sadd.s32 1, %s17
      %s34 = scalar_select %p31, %s33, %s17
      %p35 = scmp.ge.s32.totalorder %s34, 2
      %s36 = scalar_select %p35, 0, %s34
      %s37 = ssub.s32 %s17, %s36
      %s38 = ssub.s32 %s18, %s32
      %s39 = sor.u32 %s37, %s38
      %s40 = ssub.s32 %s19, %s28
      %s41 = sor.u32 %s39, %s40
      %p42 = scmp.eq.s32.totalorder %s41, 0
      %s44 = sadd.s32 %s43, 1
      %s45 = scalar_select %p42, %s43, %s44
      %p48 = pneg %p42
      %p49 = scmp.eq.s32.totalorder %s10, 1
      %p50 = por %p48, %p49
      %p51 = scmp.ne.s32.totalorder %s43, %s46
      %p52 = scmp.eq.s32.totalorder %s10, 0
      %p53 = por %p51, %p52
      %p54 = scmp.ne.s32.totalorder %s43, %s46
      %p55 = scmp.eq.s32.totalorder %s15, 1
      %p56 = por %p54, %p55
      %p57 = scmp.ne.s32.totalorder %s46, %s47
      %p58 = scmp.eq.s32.totalorder %s15, 0
      %p59 = por %p57, %p58
      %p60 = scmp.ne.s32.totalorder %s46, %s47
      %p61 = scmp.eq.s32.totalorder %s16, 1
      %p62 = por %p60, %p61
      %p64 = scmp.ne.s32.totalorder %s47, %s63
      %p65 = scmp.eq.s32.totalorder %s16, 0
      %p66 = por %p64, %p65
      %s67 = ssub.s32 %s17, %s36
      %s68 = ssub.s32 %s18, %s32
      %s69 = sor.u32 %s67, %s68
      %p70 = scmp.eq.s32.totalorder %s69, 0
      %s72 = sadd.s32 %s71, 1
      %s73 = scalar_select %p70, %s71, %s72
      %p76 = pneg %p70
      %p77 = scmp.eq.s32.totalorder %s10, 1
      %p78 = por %p76, %p77
      %p79 = scmp.ne.s32.totalorder %s71, %s74
      %p80 = scmp.eq.s32.totalorder %s10, 0
      %p81 = por %p79, %p80
      %p82 = scmp.ne.s32.totalorder %s71, %s74
      %p83 = scmp.eq.s32.totalorder %s15, 1
      %p84 = por %p82, %p83
      %p85 = scmp.ne.s32.totalorder %s74, %s75
      %p86 = scmp.eq.s32.totalorder %s15, 0
      %p87 = por %p85, %p86
      %p88 = scmp.ne.s32.totalorder %s74, %s75
      %p89 = scmp.eq.s32.totalorder %s16, 1
      %p90 = por %p88, %p89
      %p92 = scmp.ne.s32.totalorder %s75, %s91
      %p93 = scmp.eq.s32.totalorder %s16, 0
      %p94 = por %p92, %p93
      %p95 = scmp.le.s32.totalorder 1, %s10
      %p96 = scmp.lt.s32.totalorder %s10, 3
      %p97 = pnand %p95, %p96
      %p98 = pneg %p97
      // Predicated region
      $region9: #{tpu_custom_call.1} parent=5 // pred_check
        _
      $region10: #{tpu_custom_call.1} parent=5 // pred_check_branch
        %100 = sbr.rel (%p97) target = $region12
      $region11: #{tpu_custom_call.1} parent=5 // pred_region
        %s101 = ssub.s32 %s10, 1
      $region12: #{tpu_custom_call.1} parent=5 // pred_fallthru
        _
      %p102 = scmp.lt.s32.totalorder %s10, 2
      // Predicated region
      $region13: #{tpu_custom_call.1} parent=5 // pred_check
        %p103 = pneg %p102
      $region14: #{tpu_custom_call.1} parent=5 // pred_check_branch
        %105 = sbr.rel (%p103) target = $region16
      $region15: #{tpu_custom_call.1} parent=5 // pred_region
        // Predicated region
        $region17: #{tpu_custom_call.1} parent=15 // pred_check
          %p106 = pneg %p53
        $region18: #{tpu_custom_call.1} parent=15 // pred_check_branch
          %108 = sbr.rel (%p106) target = $region20
        $region19: #{tpu_custom_call.1} parent=15 // pred_region
          %s109 = sand.u32 %s43, 1
          %s110 = scalar_lea.sflag [#allocation5], %s109
          %s111 = sand.u32 %s43, 1
          %s112 = smul.addr %s111, 8
          %s113 = scalar_lea.vmem [#allocation4], %s112
          %s114 = smul.u32 2, %s19
          %s116 = ssub.s32 128, 128
          %117 = vsyncadd %s110, %s116
          %s118 = smul.addr %s18, 2
          %s119 = sadd.s32 %s114, %s118
          %s120 = smul.addr %s17, 2
          %s121 = sadd.s32 %s119, %s120
          %s122 = smul.addr %s121, 64
          %s123 = scalar_lea.hbm %s0, %s122
          %s125 = sshll.u32 %s113, 4
          %s126 = int_to_ptr.vmem [resolvable:$true] %s125
          %128 = dma.hbm_to_vmem [thread:$0]  %s123, 128, %s126, %s110
        $region20: #{tpu_custom_call.1} parent=15 // pred_fallthru
          _
      $region16: #{tpu_custom_call.1} parent=5 // pred_fallthru
        _
      %p129 = scmp.le.s32.totalorder 1, %s10
      %p130 = scmp.lt.s32.totalorder %s10, 3
      %p131 = pnand %p129, %p130
      %p132 = pneg %p131
      // Predicated region
      $region21: #{tpu_custom_call.1} parent=5 // pred_check
        _
      $region22: #{tpu_custom_call.1} parent=5 // pred_check_branch
        %134 = sbr.rel (%p131) target = $region24
      $region23: #{tpu_custom_call.1} parent=5 // pred_region
        %s135 = ssub.s32 %s10, 1
        %s136 = sand.u32 %s46, 1
        %s137 = scalar_lea.sflag [#allocation5], %s136
        %s138 = sand.u32 %s46, 1
        %s139 = smul.addr %s138, 8
        %s140 = scalar_lea.vmem [#allocation4], %s139
        // Predicated region
        $region25: #{tpu_custom_call.1} parent=23 // pred_check
          %p141 = pneg %p59
        $region26: #{tpu_custom_call.1} parent=23 // pred_check_branch
          %143 = sbr.rel (%p141) target = $region28
        $region27: #{tpu_custom_call.1} parent=23 // pred_region
          %144 = dma.done %s137, 128
        $region28: #{tpu_custom_call.1} parent=23 // pred_fallthru
          _
        %s145 = sand.u32 %s46, 1
        %s146 = scalar_lea.sflag [#allocation5], %s145
        %s147 = sand.u32 %s46, 1
        %s148 = smul.addr %s147, 8
        %s149 = scalar_lea.vmem [#allocation4], %s148
        %p150 = pneg %p59
        %p151 = pneg %p56
        %p152 = pneg %p87
        %p153 = pneg %p84
        %p154 = scmp.lt.s32.totalorder %s20, 1
        %s155 = scalar_select %p154, %s20, 1
        %p156 = scmp.lt.s32.totalorder %s21, 0
        %s157 = scalar_select %p156, %s21, 0
        %s158 = sadd.s32 %s157, %s155
        %s159 = smul.addr %s158, 4
        %s160 = scalar_lea.vmem %s1, %s159
        %s161 = smul.u32 2, %s22
        %p162 = scmp.lt.s32.totalorder %s20, 1
        %s163 = scalar_select %p162, %s20, 1
        %p164 = scmp.lt.s32.totalorder %s21, 0
        %s165 = scalar_select %p164, %s21, 0
        %s166 = sadd.s32 %s165, %s163
        %s167 = smul.addr %s166, 4
        %s168 = scalar_lea.vmem %s1, %s167
        %p169 = scmp.eq.s32.totalorder %s22, 0
        // Predicated region
        $region29: #{tpu_custom_call.1} parent=23 // pred_check
          %p170 = pneg %p169
        $region30: #{tpu_custom_call.1} parent=23 // pred_check_branch
          %172 = sbr.rel (%p170) target = $region32
        $region31: #{tpu_custom_call.1} parent=23 // pred_region
          %vm173 = vcmask 3072
          %174 = vst.msk [vmem:[#allocation2] sm:$0xf] %vm173, 0.0
          %175 = vst.msk [vmem:[#allocation3] sm:$0xf] %vm173, -inf
        $region32: #{tpu_custom_call.1} parent=23 // pred_fallthru
          _
        %v176 = vld [vmem:[%s140] sm:$0xff]
        %v177 = vld [vmem:[#allocation2] sm:$0xf]
        %v179 = vcombine.high %v176, %v176
        %vm181 = vcmask 1043456
        %v182 = vsel %vm181, %v176, 0.0
        %v183 = vsel %vm181, %v179, 0.0
        %v184 = vadd.f32 %v182, %v183
        %185 = vadd.xlane.f32.xlu0 %v184
        %v186 = vpop.xlane.xlu0 %185
        %v187 = vadd.f32 %v177, %v186
        %vm188 = vcmask 3072
        %189 = vst.msk [vmem:[#allocation2] sm:$0xf] %vm188, %v187
        %v190 = vld [vmem:[#allocation3] sm:$0xf]
        %v191 = vsel %vm181, %v176, -inf
        %v192 = vsel %vm181, %v179, -inf
        %v193 = vmax.f32 %v191, %v192
        %194 = vmax.xlane.f32.xlu0 %v193
        %v195 = vpop.xlane.xlu0 %194
        %v196 = vmax.f32 %v190, %v195
        %197 = vst.msk [vmem:[#allocation3] sm:$0xf] %vm188, %v196
        // Predicated region
        $region33: #{tpu_custom_call.1} parent=23 // pred_check
          %p198 = pneg %p169
        $region34: #{tpu_custom_call.1} parent=23 // pred_check_branch
          %200 = sbr.rel (%p198) target = $region36
        $region35: #{tpu_custom_call.1} parent=23 // pred_region
          %v201 = vld [vmem:[#allocation2] sm:$0xf]
          %v202 = vmul.f32 %v201, 0.00390625
          %203 = vst.msk [vmem:[%s168] sm:$0xf] %vm188, %v202
          %v204 = vld [vmem:[#allocation3] sm:$0xf]
          %206 = vrot.lane.b32.xlu0 %v204, 1
          %v207 = vpop.permute.xlu0 %206
          %vm209 = vcmask 11272
          %210 = vst.msk [vmem:[%s168] sm:$0xf] %vm209, %v207
        $region36: #{tpu_custom_call.1} parent=23 // pred_fallthru
          _
        %p211 = scmp.lt.s32.totalorder %s20, 1
        %s212 = scalar_select %p211, %s20, 1
        %p213 = scmp.lt.s32.totalorder %s21, 0
        %s214 = scalar_select %p213, %s21, 0
        %s215 = sadd.s32 %s214, %s212
        %s216 = smul.addr %s215, 4
        %s217 = scalar_lea.vmem %s1, %s216
        // Predicated region
        $region37: #{tpu_custom_call.1} parent=23 // pred_check
          %p218 = pneg %p84
        $region38: #{tpu_custom_call.1} parent=23 // pred_check_branch
          %220 = sbr.rel (%p218) target = $region40
        $region39: #{tpu_custom_call.1} parent=23 // pred_region
          _
        $region40: #{tpu_custom_call.1} parent=23 // pred_fallthru
          _
      $region24: #{tpu_custom_call.1} parent=5 // pred_fallthru
        _
      %p221 = scmp.le.s32.totalorder 2, %s10
      // Predicated region
      $region41: #{tpu_custom_call.1} parent=5 // pred_check
        %p222 = pneg %p221
      $region42: #{tpu_custom_call.1} parent=5 // pred_check_branch
        %224 = sbr.rel (%p222) target = $region44
      $region43: #{tpu_custom_call.1} parent=5 // pred_region
        %s225 = ssub.s32 %s10, 2
        // Predicated region
        $region45: #{tpu_custom_call.1} parent=43 // pred_check
          %p226 = pneg %p90
        $region46: #{tpu_custom_call.1} parent=43 // pred_check_branch
          %228 = sbr.rel (%p226) target = $region48
        $region47: #{tpu_custom_call.1} parent=43 // pred_region
          %p229 = scmp.lt.s32.totalorder %s23, 1
          %s230 = scalar_select %p229, %s23, 1
          %p231 = scmp.lt.s32.totalorder %s24, 0
          %s232 = scalar_select %p231, %s24, 0
          %s233 = sadd.s32 %s232, %s230
          %s234 = smul.addr %s233, 4
          %s235 = scalar_lea.vmem %s1, %s234
        $region48: #{tpu_custom_call.1} parent=43 // pred_fallthru
          _
      $region44: #{tpu_custom_call.1} parent=5 // pred_fallthru
        _
    $region6: #{tpu_custom_call.1} parent=1 // loop_footer
      %s14 = sadd.s32 1, %s10
    $region7: #{tpu_custom_call.1} parent=1 // loop_footer_branch
      %9 = sbr.rel target = $region3
    $region8: #{tpu_custom_call.1} parent=1 // loop_exit
      _
    %236 = vsyncpa [#allocation5], 1
    %s237 = scalar_lea.sflag [#allocation5], 1
    %238 = vsyncpa %s237, 1

</llo_original>
